<compile_context>
chip_gen: v6e
topology: v6e:2x2x1
jax: 0.10.0
libtpu: 0.0.40
codegen_flags: <defaults>
</compile_context>

<pallas_src>
import functools

import jax
import jax.numpy as jnp
from jax import lax
from jax.experimental import pallas as pl
from jax.experimental.pallas import tpu as pltpu

ALPHA = 0.25
GAMMA = 2.0

LANE = 128        # lane width (last dim)
SUBLANE = 8       # f32 sublane tile
CHUNK_ROWS = 256  # 256*128*4 B = 128 KiB per chunk per input -> bounded VMEM/vreg use


def _pick_row_tile(rows):
    """Rows per grid block.

    Biggest sublane-aligned tile that (a) keeps double-buffered inputs well
    inside scoped VMEM on every TPU generation and (b) yields >= 2 grid blocks
    for mid/large inputs so the "parallel" grid axis spans both TensorCores
    on v7x.
    """
    max_tile = 2048                       # 1 MiB/input/step: ~85% of v6e HBM roofline
    try:
        kind = jax.devices()[0].device_kind.lower()
        if "v5 lite" in kind or "v5e" in kind:
            max_tile = 1024               # v5e: 16 MiB default scoped VMEM
        elif "7" in kind:
            max_tile = 4096               # v7x: 3.2 TB/s/TC, amortize per-step overhead
    except Exception:
        pass

    if rows <= CHUNK_ROWS:
        return SUBLANE * pl.cdiv(rows, SUBLANE)           # single small block
    if rows <= 4 * CHUNK_ROWS:
        return CHUNK_ROWS * pl.cdiv(rows, CHUNK_ROWS)     # single block (<= 1024 rows)
    # >= 2 blocks (megacore-friendly), capped at max_tile, multiple of CHUNK_ROWS.
    half = CHUNK_ROWS * pl.cdiv(pl.cdiv(rows, 2), CHUNK_ROWS)
    return min(max_tile, half)


def _focal_loss_kernel(x_ref, t_ref, out_ref, *, gamma, row_tile, chunk,
                       valid_rows, rem, need_mask):
    """One (row_tile, LANE) block -> (8, LANE) partial sum of (1-p_t)^g * ce."""
    n_chunks = row_tile // chunk

    def body(ci, acc):
        r0 = pl.multiple_of(ci * chunk, chunk)
        x = x_ref[pl.ds(r0, chunk), :].astype(jnp.float32)
        t = t_ref[pl.ds(r0, chunk), :].astype(jnp.float32)

        # One transcendental exp per element; reused for sigmoid and log1p.
        e = jnp.exp(-jnp.abs(x))                       # exp(-|x|), EUP
        inv = pl.reciprocal(1.0 + e, approx=True)      # 1/(1+e), EUP (cheap slot)
        p = jnp.where(x >= 0.0, inv, e * inv)          # sigmoid(x)

        # BCEWithLogitsLoss(reduction='none'), numerically stable (PyTorch form):
        #   max(x, 0) - x*t + log(1 + exp(-|x|))
        ce = jnp.maximum(x, 0.0) - x * t + jnp.log1p(e)

        # w = 1 - p_t = p + t - 2*p*t   (alpha hoisted to the wrapper)
        w = p + t - 2.0 * (p * t)
        if gamma == 2.0:
            fw = w * w                                  # explicit square: no pow/EUP log
        else:
            fw = w ** gamma                             # generic fallback
        vals = fw * ce                                  # (chunk, LANE)

        if need_mask:
            # Ragged-tail masking (only compiled in when the shape needs it):
            # ~3 extra VPU ops/element, hidden under HBM time on v5e/v6e.
            base = pl.program_id(0) * row_tile + r0
            row_ids = base + lax.broadcasted_iota(jnp.int32, (chunk, LANE), 0)
            if rem == 0:
                valid = row_ids < valid_rows
            else:
                lane_ids = lax.broadcasted_iota(jnp.int32, (chunk, LANE), 1)
                valid = (row_ids < valid_rows - 1) | (
                    (row_ids == valid_rows - 1) & (lane_ids < rem)
                )
            vals = jnp.where(valid, vals, 0.0)

        # Vreg-shaped partial sum: regroup sublanes and add (pure VPU, no
        # per-step cross-lane XLU reduce, no masked (1,1) stores).
        return acc + jnp.sum(vals.reshape(chunk // SUBLANE, SUBLANE, LANE), axis=0)

    acc = lax.fori_loop(0, n_chunks, body,
                        jnp.zeros((SUBLANE, LANE), jnp.float32), unroll=True)
    out_ref[...] = acc


def focal_loss(logits, targets, alpha=ALPHA, gamma=GAMMA):
    """Mean sigmoid focal loss (matches the PyTorch FocalLoss.forward).

    Caller contract: pass `targets` (and `logits`, if acceptable) in the
    narrowest dtype available upstream (bool / int8 / bf16) -- the kernel
    upcasts to f32 in VMEM and is HBM-bound, so narrower inputs give a
    near-proportional speedup.  No wrapper-side cast is performed.
    """
    assert logits.shape == targets.shape
    n = logits.size

    x = logits.reshape(-1)   # free reshape (no HBM copy)
    t = targets.reshape(-1)

    rem = n % LANE
    if rem != 0:
        # Rare path (typical NCHW sizes are lane multiples): pad only up to the
        # next multiple of 128 so the free (rows, 128) reshape exists.  Padded
        # elements are masked to exactly 0 inside the kernel.
        # TODO(synk): eliminate this remaining copy (allow_input_fusion / 1-D blocks).
        pad = LANE - rem
        x = jnp.concatenate([x, jnp.zeros((pad,), x.dtype)])
        t = jnp.concatenate([t, jnp.zeros((pad,), t.dtype)])

    rows = pl.cdiv(n, LANE)
    row_tile = _pick_row_tile(rows)
    num_blocks = pl.cdiv(rows, row_tile)
    need_mask = (num_blocks * row_tile != rows) or (rem != 0)

    x2d = x.reshape(rows, LANE)   # free reshapes: lane-dense slab, no extra HBM traffic
    t2d = t.reshape(rows, LANE)

    kernel = functools.partial(
        _focal_loss_kernel,
        gamma=float(gamma),
        row_tile=row_tile,
        chunk=min(CHUNK_ROWS, row_tile),
        valid_rows=rows,
        rem=rem,
        need_mask=need_mask,
    )

    partials = pl.pallas_call(
        kernel,
        out_shape=jax.ShapeDtypeStruct((num_blocks * SUBLANE, LANE), jnp.float32),
        grid_spec=pltpu.PrefetchScalarGridSpec(
            num_scalar_prefetch=0,
            grid=(num_blocks,),
            in_specs=[
                pl.BlockSpec((row_tile, LANE), lambda i: (i, 0)),
                pl.BlockSpec((row_tile, LANE), lambda i: (i, 0)),
            ],
            out_specs=pl.BlockSpec((SUBLANE, LANE), lambda i: (i, 0)),
        ),
        compiler_params=pltpu.CompilerParams(
            dimension_semantics=("parallel",),   # independent blocks -> both TCs on v7x
        ),
    )(x2d, t2d)

    # Tiny final reduce; alpha and the mean normalization are applied here
    # (hoisted out of the per-element kernel math).
    return (jnp.float32(alpha) * jnp.sum(partials) / jnp.float32(n)).astype(jnp.float32)


def _focal_loss_ref(logits, targets, alpha=ALPHA, gamma=GAMMA):
    x = logits.astype(jnp.float32)
    t = targets.astype(jnp.float32)
    p = jax.nn.sigmoid(x)
    ce = jnp.maximum(x, 0.0) - x * t + jnp.log1p(jnp.exp(-jnp.abs(x)))
    p_t = p * t + (1.0 - p) * (1.0 - t)
    return jnp.mean(alpha * (1.0 - p_t) ** gamma * ce)


if __name__ == "__main__":
    key = jax.random.PRNGKey(0)
    k1, k2 = jax.random.split(key)

    # NCHW-like small shapes: batch=2, channels=4, spatial=16x16
    shape = (2, 4, 16, 16)
    logits = jax.random.normal(k1, shape, dtype=jnp.float32) * 2.0
    targets = (jax.random.uniform(k2, shape) > 0.5).astype(jnp.float32)

    loss = focal_loss(logits, targets)
    jax.block_until_ready(loss)

    ref = _focal_loss_ref(logits, targets)
    # Tolerance accounts for the EUP approximate reciprocal in the sigmoid path.
    assert jnp.allclose(loss, ref, rtol=2e-3, atol=1e-6), (loss, ref)

    print("KERNEL_OK")
</pallas_src>

<mosaic_0001>
module attributes {stable_mosaic.version = 11 : i64} {
  func.func @_focal_loss_kernel(%arg0: i32, %arg1: memref<16x128xf32, #tpu.memory_space<vmem>>, %arg2: memref<16x128xf32, #tpu.memory_space<vmem>>, %arg3: memref<8x128xf32, #tpu.memory_space<vmem>>) attributes {dimension_semantics = [#tpu.dimension_semantics<parallel>], iteration_bounds = array<i64: 1>, scalar_prefetch = 0 : i64, scratch_operands = 0 : i64, tpu.core_type = #tpu.core_type<tc>, window_params = [{transform_indices = @transform_0, window_bounds = array<i64: 16, 128>}, {transform_indices = @transform_1, window_bounds = array<i64: 16, 128>}, {transform_indices = @transform_2, window_bounds = array<i64: 8, 128>}]} {
    %cst = arith.constant 0.000000e+00 : f32
    %0 = vector.broadcast %cst : f32 to vector<8x128xf32>
    %c0_i32 = arith.constant 0 : i32
    %c16_i32 = arith.constant 16 : i32
    %1 = arith.muli %c0_i32, %c16_i32 : i32
    %2 = tpu.assume_multiple %1, 16 : i32
    %3 = arith.index_cast %2 : i32 to index
    %c0 = arith.constant 0 : index
    %4 = vector.load %arg1[%3, %c0] : memref<16x128xf32, #tpu.memory_space<vmem>>, vector<16x128xf32>
    %5 = arith.index_cast %2 : i32 to index
    %c0_0 = arith.constant 0 : index
    %6 = vector.load %arg2[%5, %c0_0] : memref<16x128xf32, #tpu.memory_space<vmem>>, vector<16x128xf32>
    %7 = math.absf %4 : vector<16x128xf32>
    %cst_1 = arith.constant 0.000000e+00 : f32
    %8 = vector.broadcast %cst_1 : f32 to vector<16x128xf32>
    %9 = arith.subf %8, %7 : vector<16x128xf32>
    %10 = math.exp %9 : vector<16x128xf32>
    %cst_2 = arith.constant 1.000000e+00 : f32
    %11 = vector.broadcast %cst_2 : f32 to vector<16x128xf32>
    %12 = arith.addf %11, %10 : vector<16x128xf32>
    %13 = tpu.reciprocal %12 {approx = true} : vector<16x128xf32> -> vector<16x128xf32>
    %cst_3 = arith.constant 0.000000e+00 : f32
    %14 = vector.broadcast %cst_3 : f32 to vector<16x128xf32>
    %15 = arith.cmpf oge, %4, %14 : vector<16x128xf32>
    %16 = arith.mulf %10, %13 : vector<16x128xf32>
    %17 = arith.select %15, %13, %16 : vector<16x128xi1>, vector<16x128xf32>
    %cst_4 = arith.constant 0.000000e+00 : f32
    %18 = vector.broadcast %cst_4 : f32 to vector<16x128xf32>
    %19 = arith.maximumf %4, %18 : vector<16x128xf32>
    %20 = arith.mulf %4, %6 : vector<16x128xf32>
    %21 = arith.subf %19, %20 : vector<16x128xf32>
    %22 = math.log1p %10 : vector<16x128xf32>
    %23 = arith.addf %21, %22 : vector<16x128xf32>
    %24 = arith.addf %17, %6 : vector<16x128xf32>
    %25 = arith.mulf %17, %6 : vector<16x128xf32>
    %cst_5 = arith.constant 2.000000e+00 : f32
    %26 = vector.broadcast %cst_5 : f32 to vector<16x128xf32>
    %27 = arith.mulf %26, %25 : vector<16x128xf32>
    %28 = arith.subf %24, %27 : vector<16x128xf32>
    %29 = arith.mulf %28, %28 : vector<16x128xf32>
    %30 = arith.mulf %29, %23 : vector<16x128xf32>
    %31 = vector.shape_cast %30 : vector<16x128xf32> to vector<2x8x128xf32>
    %cst_6 = arith.constant dense<0.000000e+00> : vector<8x128xf32>
    %32 = vector.multi_reduction <add>, %31, %cst_6 [0] : vector<2x8x128xf32> to vector<8x128xf32>
    %33 = arith.addf %0, %32 : vector<8x128xf32>
    %c1_i32 = arith.constant 1 : i32
    %c0_7 = arith.constant 0 : index
    %c0_8 = arith.constant 0 : index
    %34 = vector.load %arg3[%c0_7, %c0_8] : memref<8x128xf32, #tpu.memory_space<vmem>>, vector<8x128xf32>
    tpu.vector_store %arg3[%c0_7, %c0_8], %33 {strides = array<i32>} : memref<8x128xf32, #tpu.memory_space<vmem>>, vector<8x128xf32>,
    return
  }
  func.func @transform_0(%arg0: i32) -> (i32, i32) {
    %c0_i32 = arith.constant 0 : i32
    %c0_i32_0 = arith.constant 0 : i32
    return %arg0, %c0_i32 : i32, i32
  }
  func.func @transform_1(%arg0: i32) -> (i32, i32) {
    %c0_i32 = arith.constant 0 : i32
    %c0_i32_0 = arith.constant 0 : i32
    return %arg0, %c0_i32 : i32, i32
  }
  func.func @transform_2(%arg0: i32) -> (i32, i32) {
    %c0_i32 = arith.constant 0 : i32
    %c0_i32_0 = arith.constant 0 : i32
    return %arg0, %c0_i32 : i32, i32
  }
}

</mosaic_0001>

<llo_original>
// kernel: tpu_custom_call.1
$region0: #{tpu_custom_call.1}
  #allocation0 [shape = 'u32[]', space=smem, size = 0x4, offset = 0x4, fixed_abs, tag = 'smem constant byte address 0x4 - core index']
  #allocation1 [shape = 'u32[144,128]{1,0:T(1,128)}', space=vmem, size = 0x12000, scoped, tag = 'internal scratch']
  %s0 = inlined_call_operand.hbm [shape: f32[16,128], index: 0, kind: input, shape index: {}]
  %s1 = inlined_call_operand.hbm [shape: f32[16,128], index: 1, kind: input, shape index: {}]
  %s2 = inlined_call_operand.hbm [shape: f32[8,128], index: 2, kind: output, shape index: {}]
  %s3 = sld [smem:[#allocation0]]
  $region26: #{tpu_custom_call.1} parent=0
    _
  %s5 = ssub.s32 1, %s3
  %s6 = scalar_select 0, %s5, %s3
  $region1: #{tpu_custom_call.1} parent=0
    #allocation2 [shape = 'u8[8192]{0}', space=vmem, size = 0x2000, scoped, tag = 'input window, operand 0, single buffered']
    #allocation3 [shape = 's32[1]{0}', space=sflag, size = 0x4, scoped, tag = 'scoped memory for tpu_custom_call.1']
    #allocation4 [shape = 's32[1]{0}', space=sflag, size = 0x4, scoped, tag = 'scoped memory for tpu_custom_call.1']
    #allocation5 [shape = 'u8[8192]{0}', space=vmem, size = 0x2000, scoped, tag = 'input window, operand 1, single buffered']
    #allocation6 [shape = 's32[1]{0}', space=sflag, size = 0x4, scoped, tag = 'scoped memory for tpu_custom_call.1']
    #allocation7 [shape = 'u8[4096]{0}', space=vmem, size = 0x1000, scoped, tag = 'output window, operand 0, single buffered']
    %7 = vsyncpa [#allocation3], 0
    %8 = vsyncpa [#allocation6], 0
    %9 = vsyncpa [#allocation4], 0
    // Predicated region
    $region2: #{tpu_custom_call.1} parent=1 // pred_check
      _
    $region3: #{tpu_custom_call.1} parent=1 // pred_check_branch
      %11 = sbr.rel (0) target = $region5
    $region4: #{tpu_custom_call.1} parent=1 // pred_region
      %s13 = ssub.s32 256, 256
      %14 = vsyncadd [#allocation3], %s13
      %s15 = sshll.u32 [#allocation2], 4
      %s16 = int_to_ptr.vmem [resolvable:$true] %s15
      %21 = dma.hbm_to_vmem [thread:$0]  %s0, 256, %s16, [#allocation3], 128, 128, 8
    $region5: #{tpu_custom_call.1} parent=1 // pred_fallthru
      _
    // Predicated region
    $region6: #{tpu_custom_call.1} parent=1 // pred_check
      _
    $region7: #{tpu_custom_call.1} parent=1 // pred_check_branch
      %23 = sbr.rel (0) target = $region9
    $region8: #{tpu_custom_call.1} parent=1 // pred_region
      %s25 = ssub.s32 256, 256
      %26 = vsyncadd [#allocation6], %s25
      %s27 = sshll.u32 [#allocation5], 4
      %s28 = int_to_ptr.vmem [resolvable:$true] %s27
      %33 = dma.hbm_to_vmem [thread:$0]  %s1, 256, %s28, [#allocation6], 128, 128, 8
    $region9: #{tpu_custom_call.1} parent=1 // pred_fallthru
      _
    // Predicated region
    $region10: #{tpu_custom_call.1} parent=1 // pred_check
      _
    $region11: #{tpu_custom_call.1} parent=1 // pred_check_branch
      %35 = sbr.rel (0) target = $region13
    $region12: #{tpu_custom_call.1} parent=1 // pred_region
      %36 = dma.done [#allocation3], 256
    $region13: #{tpu_custom_call.1} parent=1 // pred_fallthru
      _
    // Predicated region
    $region14: #{tpu_custom_call.1} parent=1 // pred_check
      _
    $region15: #{tpu_custom_call.1} parent=1 // pred_check_branch
      %38 = sbr.rel (0) target = $region17
    $region16: #{tpu_custom_call.1} parent=1 // pred_region
      %39 = dma.done [#allocation6], 256
    $region17: #{tpu_custom_call.1} parent=1 // pred_fallthru
      _
    %v40 = vld [vmem:[#allocation2] sm:$0xff]
    %v41 = vld [vmem:[#allocation2 + $0x8] sm:$0xff]
    %v42 = vld [vmem:[#allocation5] sm:$0xff]
    %v43 = vld [vmem:[#allocation5 + $0x8] sm:$0xff]
    %v44 = vand.u32 2147483647, %v40
    %v45 = vand.u32 2147483647, %v41
    %v46 = vsub.f32 0.0, %v44
    %v47 = vsub.f32 0.0, %v45
    %v48 = vmul.f32 %v46, 1.442695
    %v49 = vpow.pop %v48
    %v50 = vmul.f32 %v47, 1.442695
    %v51 = vpow.pop %v50
    %v52 = vadd.f32 %v49, 1.0
    %v53 = vadd.f32 %v51, 1.0
    %v54 = vrcp.pop %v52
    %v55 = vrcp.pop %v53
    %vm56 = vcmp.ge.f32.partialorder %v40, 0.0
    %vm57 = vcmp.ge.f32.partialorder %v41, 0.0
    %v58 = vmul.f32 %v49, %v54
    %v59 = vmul.f32 %v51, %v55
    %v60 = vsel %vm56, %v54, %v58
    %v61 = vsel %vm57, %v55, %v59
    %v62 = vmax.f32 %v40, 0.0
    %v63 = vmax.f32 %v41, 0.0
    %v64 = vmul.f32 %v40, %v42
    %v65 = vmul.f32 %v41, %v43
    %v66 = vsub.f32 %v62, %v64
    %v67 = vsub.f32 %v63, %v65
    %v68 = vadd.f32 %v49, 1.0
    %v69 = vlog2.pop %v68
    %v70 = vmul.f32 %v69, 0.6931472
    %v71 = vmul.f32 -0.5, %v49
    %v72 = vadd.f32 %v71, 1.0
    %v73 = vmul.f32 %v72, %v49
    %v74 = vand.u32 2147483647, %v49
    %vm75 = vcmp.lt.f32.partialorder %v74, 0.0004427343
    %v76 = vsel %vm75, %v73, %v70
    %v77 = vadd.f32 %v51, 1.0
    %v78 = vlog2.pop %v77
    %v79 = vmul.f32 %v78, 0.6931472
    %v80 = vmul.f32 -0.5, %v51
    %v81 = vadd.f32 %v80, 1.0
    %v82 = vmul.f32 %v81, %v51
    %v83 = vand.u32 2147483647, %v51
    %vm84 = vcmp.lt.f32.partialorder %v83, 0.0004427343
    %v85 = vsel %vm84, %v82, %v79
    %v86 = vadd.f32 %v66, %v76
    %v87 = vadd.f32 %v67, %v85
    %v88 = vadd.f32 %v60, %v42
    %v89 = vadd.f32 %v61, %v43
    %v90 = vmul.f32 %v60, %v42
    %v91 = vmul.f32 %v61, %v43
    %v92 = vmul.f32 %v90, 2.0
    %v93 = vmul.f32 %v91, 2.0
    %v94 = vsub.f32 %v88, %v92
    %v95 = vsub.f32 %v89, %v93
    %v96 = vmul.f32 %v94, %v94
    %v97 = vmul.f32 %v95, %v95
    %v98 = vmul.f32 %v96, %v86
    %v99 = vmul.f32 %v97, %v87
    %v100 = vadd.f32 %v98, %v99
    %v101 = vadd.f32 %v100, 0.0
    %102 = vst [vmem:[#allocation7] sm:$0xff] %v101
    // Predicated region
    $region18: #{tpu_custom_call.1} parent=1 // pred_check
      _
    $region19: #{tpu_custom_call.1} parent=1 // pred_check_branch
      %104 = sbr.rel (0) target = $region21
    $region20: #{tpu_custom_call.1} parent=1 // pred_region
      %s106 = ssub.s32 128, 128
      %107 = vsyncadd [#allocation4], %s106
      %s109 = sshll.u32 [#allocation7], 4
      %s110 = int_to_ptr.vmem [resolvable:$true] %s109
      %112 = dma.vmem_to_hbm [thread:$0]  %s110, 128, %s2, [#allocation4]
    $region21: #{tpu_custom_call.1} parent=1 // pred_fallthru
      _
    // Predicated region
    $region22: #{tpu_custom_call.1} parent=1 // pred_check
      _
    $region23: #{tpu_custom_call.1} parent=1 // pred_check_branch
      %114 = sbr.rel (0) target = $region25
    $region24: #{tpu_custom_call.1} parent=1 // pred_region
      %115 = dma.done [#allocation4], 128
    $region25: #{tpu_custom_call.1} parent=1 // pred_fallthru
      _
    %116 = vsyncpa [#allocation3], 1
    %117 = vsyncpa [#allocation6], 1
    %118 = vsyncpa [#allocation4], 1

</llo_original>
